<compile_context>
chip_gen: v7x
topology: tpu7x:2x2x1
jax: 0.10.0
libtpu: 0.0.40
codegen_flags: <defaults>
</compile_context>

<pallas_src>
import jax
import jax.numpy as jnp
from jax.experimental import pallas as pl
from jax.experimental.pallas import tpu as pltpu


def _fusion_kernel(x1_ref, x2_ref, w1_ref, b1_ref, w2_ref, b2_ref,
                   wf1_ref, wf2_ref, bf_ref, o_ref):
    f32 = jnp.float32
    mxu_dt = w1_ref.dtype               # MXU operand dtype (bf16 by default)

    x1 = x1_ref[...]
    x2 = x2_ref[...]

    def _sigmoid(z):
        # exp on the EUP; approx reciprocal also on the EUP -> whole sigmoid
        # stays off the VALU and avoids the inf intermediate of 1/(1+exp).
        return pl.reciprocal(1.0 + jnp.exp(-z), approx=True)

    # --- chain A: gate from x2 -> scales x1 -> first half of fc -------------
    z2 = jnp.dot(x2.astype(mxu_dt), w2_ref[...],
                 preferred_element_type=f32) + b2_ref[...].astype(f32)
    att2 = _sigmoid(z2)
    x1g = x1.astype(f32) * (1.0 + att2)                 # x1 + att2 * x1
    y = jnp.dot(x1g.astype(mxu_dt), wf1_ref[...], preferred_element_type=f32)

    # --- chain B: gate from x1 -> scales x2 -> second half of fc ------------
    # (run after chain A so z/att/gated temporaries are not all live at once;
    #  lowers compiler-managed VMEM pressure on v7x's 64 MiB.)
    z1 = jnp.dot(x1.astype(mxu_dt), w1_ref[...],
                 preferred_element_type=f32) + b1_ref[...].astype(f32)
    att1 = _sigmoid(z1)
    x2g = x2.astype(f32) * (1.0 + att1)                 # x2 + att1 * x2
    y = y + jnp.dot(x2g.astype(mxu_dt), wf2_ref[...], preferred_element_type=f32)

    y = y + bf_ref[...].astype(f32)
    o_ref[...] = jnp.maximum(y, 0.0).astype(o_ref.dtype)


def _resident_spec(shape):
    """BlockSpec for a constant-index (weight/bias) block kept resident in VMEM."""
    idx_map = lambda i: (0,) * len(shape)
    try:
        # Constant index_map -> never needs a second pipeline buffer.
        return pl.BlockSpec(shape, idx_map, pipeline_mode=pl.Buffered(1))
    except (AttributeError, TypeError):
        return pl.BlockSpec(shape, idx_map)


def _vmem_estimate(bm, D, in_bytes, w_bytes):
    io = (2 * 2 + 2) * bm * D * in_bytes          # x1/x2 + out (double-buffered)
    wts = 4 * D * D * w_bytes + 3 * D * 4         # resident weights + f32 biases
    tmp = 6 * bm * D * 4                          # live f32 temporaries in body
    return io + wts + tmp


def _choose_block_rows(B, D, block_rows, in_bytes, w_bytes):
    if block_rows is None:
        # Bigger row-blocks for small D: each grid step costs ~0.35us + a short
        # DMA burst, so aim for >=~2 MiB per activation stream.
        block_rows = (2 * 1024 * 1024) // max(D * in_bytes, 1)
        block_rows = int(max(128, min(4096, block_rows)))
    block_rows = max(8, (block_rows // 8) * 8)

    # At least 2 grid steps whenever the batch allows, so the "parallel" axis
    # can be sharded across v7x's two TensorCores and pipelining can overlap.
    half = ((B // 2) // 8) * 8
    if half >= 8:
        block_rows = min(block_rows, half)

    if B <= block_rows:
        return B            # tiny batch: single full block (shapes == array dims)

    bm = block_rows
    budget = 48 * 1024 * 1024   # stay comfortably inside v7x's 64 MiB VMEM
    while bm > 64 and _vmem_estimate(bm, D, in_bytes, w_bytes) > budget:
        bm = max(64, ((bm // 2) // 8) * 8)
    return bm


def residual_fusion_block(x1, x2, w1, b1, w2, b2, wf, bf, *,
                          block_rows=None, matmul_dtype=jnp.bfloat16):
    """Forward pass of ResidualFUsionBlock as one fused pallas_call.

    Weights use (in_features, out_features) layout (transpose of
    nn.Linear.weight).  `wf` has shape (2*D, D): rows [:D] multiply the gated
    x1, rows [D:] the gated x2 (equivalent to Linear on the concat).
    matmul_dtype sets the MXU operand dtype; accumulation is always f32.
    """
    B, D = x1.shape
    assert x2.shape == (B, D)
    assert w1.shape == (D, D) and w2.shape == (D, D)
    assert wf.shape == (2 * D, D)

    in_bytes = jnp.dtype(x1.dtype).itemsize
    w_bytes = jnp.dtype(matmul_dtype).itemsize

    # Static weight split replaces the runtime torch.cat on activations.
    # MXU operands in matmul_dtype; biases stay f32 (added post-accumulation).
    w1c = w1.astype(matmul_dtype)
    w2c = w2.astype(matmul_dtype)
    wf1 = wf[:D].astype(matmul_dtype)
    wf2 = wf[D:].astype(matmul_dtype)
    b1_2d = b1.reshape(1, D).astype(jnp.float32)
    b2_2d = b2.reshape(1, D).astype(jnp.float32)
    bf_2d = bf.reshape(1, D).astype(jnp.float32)

    bm = _choose_block_rows(B, D, block_rows, in_bytes, w_bytes)
    grid = (pl.cdiv(B, bm),)

    row_spec = pl.BlockSpec((bm, D), lambda i: (i, 0))
    w_spec = _resident_spec((D, D))     # resident, single-buffered
    b_spec = _resident_spec((1, D))

    vmem_est = _vmem_estimate(bm, D, in_bytes, w_bytes)
    vmem_limit = int(min(110 * 2**20, max(16 * 2**20, 2 * vmem_est)))

    # TODO(synk): if the deployed D is < 128 (e.g. 32 here) the lane dim is
    # under-dense (masked stores, only D/128 of the MXU used); padding D to a
    # multiple of 128 is a model-level change and is not done in this kernel.
    cost = pl.CostEstimate(
        flops=8 * B * D * D,
        transcendentals=2 * B * D,
        bytes_accessed=(2 * B * D * in_bytes            # x1, x2
                        + 4 * D * D * w_bytes + 3 * D * 4  # weights + biases
                        + B * D * in_bytes),             # output
    )

    return pl.pallas_call(
        _fusion_kernel,
        out_shape=jax.ShapeDtypeStruct((B, D), x1.dtype),
        grid_spec=pltpu.PrefetchScalarGridSpec(
            num_scalar_prefetch=0,
            grid=grid,
            in_specs=[row_spec, row_spec,
                      w_spec, b_spec,
                      w_spec, b_spec,
                      w_spec, w_spec, b_spec],
            out_specs=row_spec,
        ),
        compiler_params=pltpu.CompilerParams(
            dimension_semantics=("parallel",),
            vmem_limit_bytes=vmem_limit,
        ),
        cost_estimate=cost,
    )(x1, x2, w1c, b1_2d, w2c, b2_2d, wf1, wf2, bf_2d)


if __name__ == "__main__":
    key = jax.random.PRNGKey(0)
    B, D = 2, 32
    k = jax.random.split(key, 8)

    x1 = jax.random.normal(k[0], (B, D), dtype=jnp.float32)
    x2 = jax.random.normal(k[1], (B, D), dtype=jnp.float32)
    w1 = jax.random.normal(k[2], (D, D), dtype=jnp.float32) * 0.1
    b1 = jax.random.normal(k[3], (D,), dtype=jnp.float32) * 0.1
    w2 = jax.random.normal(k[4], (D, D), dtype=jnp.float32) * 0.1
    b2 = jax.random.normal(k[5], (D,), dtype=jnp.float32) * 0.1
    wf = jax.random.normal(k[6], (2 * D, D), dtype=jnp.float32) * 0.1
    bf = jax.random.normal(k[7], (D,), dtype=jnp.float32) * 0.1

    y = residual_fusion_block(x1, x2, w1, b1, w2, b2, wf, bf)
    y = jax.block_until_ready(y)

    # Plain-JAX f32 reference (identical math to the PyTorch forward).
    att1 = jax.nn.sigmoid(x1 @ w1 + b1)
    att2 = jax.nn.sigmoid(x2 @ w2 + b2)
    x1g = x1 + att2 * x1
    x2g = x2 + att1 * x2
    ref_f32 = jnp.maximum(jnp.concatenate([x1g, x2g], axis=1) @ wf + bf, 0.0)

    # Reference that applies the same bf16 MXU-operand rounding the kernel uses.
    bf16, f32 = jnp.bfloat16, jnp.float32
    def dot16(a, w):
        return jnp.dot(a.astype(bf16), w.astype(bf16), preferred_element_type=f32)
    a1 = jax.nn.sigmoid(dot16(x1, w1) + b1)
    a2 = jax.nn.sigmoid(dot16(x2, w2) + b2)
    g1 = x1 * (1.0 + a2)
    g2 = x2 * (1.0 + a1)
    ref_bf16 = jnp.maximum(dot16(g1, wf[:D]) + dot16(g2, wf[D:]) + bf, 0.0)

    assert y.shape == ref_f32.shape and y.dtype == x1.dtype
    assert not bool(jnp.any(jnp.isnan(y)))
    # bf16 operand rounding + approx EUP reciprocal -> loosened tolerances.
    assert jnp.allclose(y, ref_bf16, atol=2e-2, rtol=2e-2)
    assert jnp.allclose(y, ref_f32, atol=5e-2, rtol=5e-2)

    print("KERNEL_OK")
</pallas_src>

<mosaic_0001>
module attributes {stable_mosaic.version = 11 : i64} {
  func.func @_fusion_kernel(%arg0: i32, %arg1: memref<2x32xf32, #tpu.memory_space<vmem>>, %arg2: memref<2x32xf32, #tpu.memory_space<vmem>>, %arg3: memref<32x32xbf16, #tpu.memory_space<vmem>>, %arg4: memref<1x32xf32, #tpu.memory_space<vmem>>, %arg5: memref<32x32xbf16, #tpu.memory_space<vmem>>, %arg6: memref<1x32xf32, #tpu.memory_space<vmem>>, %arg7: memref<32x32xbf16, #tpu.memory_space<vmem>>, %arg8: memref<32x32xbf16, #tpu.memory_space<vmem>>, %arg9: memref<1x32xf32, #tpu.memory_space<vmem>>, %arg10: memref<2x32xf32, #tpu.memory_space<vmem>>) attributes {dimension_semantics = [#tpu.dimension_semantics<parallel>], iteration_bounds = array<i64: 1>, scalar_prefetch = 0 : i64, scratch_operands = 0 : i64, tpu.core_type = #tpu.core_type<tc>, window_params = [{transform_indices = @transform_0, window_bounds = array<i64: 2, 32>}, {transform_indices = @transform_1, window_bounds = array<i64: 2, 32>}, {pipeline_mode = #tpu.pipeline_mode<synchronous>, transform_indices = @transform_2, window_bounds = array<i64: 32, 32>}, {pipeline_mode = #tpu.pipeline_mode<synchronous>, transform_indices = @transform_3, window_bounds = array<i64: 1, 32>}, {pipeline_mode = #tpu.pipeline_mode<synchronous>, transform_indices = @transform_4, window_bounds = array<i64: 32, 32>}, {pipeline_mode = #tpu.pipeline_mode<synchronous>, transform_indices = @transform_5, window_bounds = array<i64: 1, 32>}, {pipeline_mode = #tpu.pipeline_mode<synchronous>, transform_indices = @transform_6, window_bounds = array<i64: 32, 32>}, {pipeline_mode = #tpu.pipeline_mode<synchronous>, transform_indices = @transform_7, window_bounds = array<i64: 32, 32>}, {pipeline_mode = #tpu.pipeline_mode<synchronous>, transform_indices = @transform_8, window_bounds = array<i64: 1, 32>}, {transform_indices = @transform_9, window_bounds = array<i64: 2, 32>}]} {
    %c0 = arith.constant 0 : index
    %c0_0 = arith.constant 0 : index
    %0 = vector.load %arg1[%c0, %c0_0] : memref<2x32xf32, #tpu.memory_space<vmem>>, vector<2x32xf32>
    %c0_1 = arith.constant 0 : index
    %c0_2 = arith.constant 0 : index
    %1 = vector.load %arg2[%c0_1, %c0_2] : memref<2x32xf32, #tpu.memory_space<vmem>>, vector<2x32xf32>
    %2 = arith.truncf %1 : vector<2x32xf32> to vector<2x32xbf16>
    %c0_3 = arith.constant 0 : index
    %c0_4 = arith.constant 0 : index
    %3 = vector.load %arg5[%c0_3, %c0_4] : memref<32x32xbf16, #tpu.memory_space<vmem>>, vector<32x32xbf16>
    %cst = arith.constant dense<0.000000e+00> : vector<2x32xf32>
    %4 = tpu.matmul %2, %3, %cst {dimension_numbers = #tpu.dot_dimension_numbers<[1], [0], [0], [1], [0, 0, 1, 1], [], []>} : vector<2x32xbf16>, vector<32x32xbf16>, vector<2x32xf32> -> vector<2x32xf32>
    %c0_5 = arith.constant 0 : index
    %c0_6 = arith.constant 0 : index
    %5 = vector.load %arg6[%c0_5, %c0_6] : memref<1x32xf32, #tpu.memory_space<vmem>>, vector<1x32xf32>
    %6 = vector.broadcast %5 : vector<1x32xf32> to vector<2x32xf32>
    %7 = arith.addf %4, %6 : vector<2x32xf32>
    %cst_7 = arith.constant 0.000000e+00 : f32
    %8 = vector.broadcast %cst_7 : f32 to vector<2x32xf32>
    %9 = arith.subf %8, %7 : vector<2x32xf32>
    %10 = math.exp %9 : vector<2x32xf32>
    %cst_8 = arith.constant 1.000000e+00 : f32
    %11 = vector.broadcast %cst_8 : f32 to vector<2x32xf32>
    %12 = arith.addf %11, %10 : vector<2x32xf32>
    %13 = tpu.reciprocal %12 {approx = true} : vector<2x32xf32> -> vector<2x32xf32>
    %cst_9 = arith.constant 1.000000e+00 : f32
    %14 = vector.broadcast %cst_9 : f32 to vector<2x32xf32>
    %15 = arith.addf %14, %13 : vector<2x32xf32>
    %16 = arith.mulf %0, %15 : vector<2x32xf32>
    %17 = arith.truncf %16 : vector<2x32xf32> to vector<2x32xbf16>
    %c0_10 = arith.constant 0 : index
    %c0_11 = arith.constant 0 : index
    %18 = vector.load %arg7[%c0_10, %c0_11] : memref<32x32xbf16, #tpu.memory_space<vmem>>, vector<32x32xbf16>
    %cst_12 = arith.constant dense<0.000000e+00> : vector<2x32xf32>
    %19 = tpu.matmul %17, %18, %cst_12 {dimension_numbers = #tpu.dot_dimension_numbers<[1], [0], [0], [1], [0, 0, 1, 1], [], []>} : vector<2x32xbf16>, vector<32x32xbf16>, vector<2x32xf32> -> vector<2x32xf32>
    %20 = arith.truncf %0 : vector<2x32xf32> to vector<2x32xbf16>
    %c0_13 = arith.constant 0 : index
    %c0_14 = arith.constant 0 : index
    %21 = vector.load %arg3[%c0_13, %c0_14] : memref<32x32xbf16, #tpu.memory_space<vmem>>, vector<32x32xbf16>
    %cst_15 = arith.constant dense<0.000000e+00> : vector<2x32xf32>
    %22 = tpu.matmul %20, %21, %cst_15 {dimension_numbers = #tpu.dot_dimension_numbers<[1], [0], [0], [1], [0, 0, 1, 1], [], []>} : vector<2x32xbf16>, vector<32x32xbf16>, vector<2x32xf32> -> vector<2x32xf32>
    %c0_16 = arith.constant 0 : index
    %c0_17 = arith.constant 0 : index
    %23 = vector.load %arg4[%c0_16, %c0_17] : memref<1x32xf32, #tpu.memory_space<vmem>>, vector<1x32xf32>
    %24 = vector.broadcast %23 : vector<1x32xf32> to vector<2x32xf32>
    %25 = arith.addf %22, %24 : vector<2x32xf32>
    %cst_18 = arith.constant 0.000000e+00 : f32
    %26 = vector.broadcast %cst_18 : f32 to vector<2x32xf32>
    %27 = arith.subf %26, %25 : vector<2x32xf32>
    %28 = math.exp %27 : vector<2x32xf32>
    %cst_19 = arith.constant 1.000000e+00 : f32
    %29 = vector.broadcast %cst_19 : f32 to vector<2x32xf32>
    %30 = arith.addf %29, %28 : vector<2x32xf32>
    %31 = tpu.reciprocal %30 {approx = true} : vector<2x32xf32> -> vector<2x32xf32>
    %cst_20 = arith.constant 1.000000e+00 : f32
    %32 = vector.broadcast %cst_20 : f32 to vector<2x32xf32>
    %33 = arith.addf %32, %31 : vector<2x32xf32>
    %34 = arith.mulf %1, %33 : vector<2x32xf32>
    %35 = arith.truncf %34 : vector<2x32xf32> to vector<2x32xbf16>
    %c0_21 = arith.constant 0 : index
    %c0_22 = arith.constant 0 : index
    %36 = vector.load %arg8[%c0_21, %c0_22] : memref<32x32xbf16, #tpu.memory_space<vmem>>, vector<32x32xbf16>
    %cst_23 = arith.constant dense<0.000000e+00> : vector<2x32xf32>
    %37 = tpu.matmul %35, %36, %cst_23 {dimension_numbers = #tpu.dot_dimension_numbers<[1], [0], [0], [1], [0, 0, 1, 1], [], []>} : vector<2x32xbf16>, vector<32x32xbf16>, vector<2x32xf32> -> vector<2x32xf32>
    %38 = arith.addf %19, %37 : vector<2x32xf32>
    %c0_24 = arith.constant 0 : index
    %c0_25 = arith.constant 0 : index
    %39 = vector.load %arg9[%c0_24, %c0_25] : memref<1x32xf32, #tpu.memory_space<vmem>>, vector<1x32xf32>
    %40 = vector.broadcast %39 : vector<1x32xf32> to vector<2x32xf32>
    %41 = arith.addf %38, %40 : vector<2x32xf32>
    %cst_26 = arith.constant 0.000000e+00 : f32
    %42 = vector.broadcast %cst_26 : f32 to vector<2x32xf32>
    %43 = arith.maximumf %41, %42 : vector<2x32xf32>
    %c0_27 = arith.constant 0 : index
    %c0_28 = arith.constant 0 : index
    %44 = vector.load %arg10[%c0_27, %c0_28] : memref<2x32xf32, #tpu.memory_space<vmem>>, vector<2x32xf32>
    tpu.vector_store %arg10[%c0_27, %c0_28], %43 {strides = array<i32>} : memref<2x32xf32, #tpu.memory_space<vmem>>, vector<2x32xf32>,
    return
  }
  func.func @transform_0(%arg0: i32) -> (i32, i32) {
    %c0_i32 = arith.constant 0 : i32
    %c0_i32_0 = arith.constant 0 : i32
    return %arg0, %c0_i32 : i32, i32
  }
  func.func @transform_1(%arg0: i32) -> (i32, i32) {
    %c0_i32 = arith.constant 0 : i32
    %c0_i32_0 = arith.constant 0 : i32
    return %arg0, %c0_i32 : i32, i32
  }
  func.func @transform_2(%arg0: i32) -> (i32, i32) {
    %c0_i32 = arith.constant 0 : i32
    %c0_i32_0 = arith.constant 0 : i32
    %c0_i32_1 = arith.constant 0 : i32
    return %c0_i32, %c0_i32_0 : i32, i32
  }
  func.func @transform_3(%arg0: i32) -> (i32, i32) {
    %c0_i32 = arith.constant 0 : i32
    %c0_i32_0 = arith.constant 0 : i32
    %c0_i32_1 = arith.constant 0 : i32
    return %c0_i32, %c0_i32_0 : i32, i32
  }
  func.func @transform_4(%arg0: i32) -> (i32, i32) {
    %c0_i32 = arith.constant 0 : i32
    %c0_i32_0 = arith.constant 0 : i32
    %c0_i32_1 = arith.constant 0 : i32
    return %c0_i32, %c0_i32_0 : i32, i32
  }
  func.func @transform_5(%arg0: i32) -> (i32, i32) {
    %c0_i32 = arith.constant 0 : i32
    %c0_i32_0 = arith.constant 0 : i32
    %c0_i32_1 = arith.constant 0 : i32
    return %c0_i32, %c0_i32_0 : i32, i32
  }
  func.func @transform_6(%arg0: i32) -> (i32, i32) {
    %c0_i32 = arith.constant 0 : i32
    %c0_i32_0 = arith.constant 0 : i32
    %c0_i32_1 = arith.constant 0 : i32
    return %c0_i32, %c0_i32_0 : i32, i32
  }
  func.func @transform_7(%arg0: i32) -> (i32, i32) {
    %c0_i32 = arith.constant 0 : i32
    %c0_i32_0 = arith.constant 0 : i32
    %c0_i32_1 = arith.constant 0 : i32
    return %c0_i32, %c0_i32_0 : i32, i32
  }
  func.func @transform_8(%arg0: i32) -> (i32, i32) {
    %c0_i32 = arith.constant 0 : i32
    %c0_i32_0 = arith.constant 0 : i32
    %c0_i32_1 = arith.constant 0 : i32
    return %c0_i32, %c0_i32_0 : i32, i32
  }
  func.func @transform_9(%arg0: i32) -> (i32, i32) {
    %c0_i32 = arith.constant 0 : i32
    %c0_i32_0 = arith.constant 0 : i32
    return %arg0, %c0_i32 : i32, i32
  }
}

</mosaic_0001>

<llo_original>
// kernel: tpu_custom_call.1
$region0: #{tpu_custom_call.1}
  #allocation0 [shape = 'u32[]', space=smem, size = 0x4, offset = 0x4, fixed_abs, tag = 'smem constant byte address 0x4 - core index']
  #allocation1 [shape = 'u32[144,128]{1,0:T(1,128)}', space=vmem, size = 0x12000, scoped, tag = 'internal scratch']
  %s0 = inlined_call_operand.hbm [shape: f32[2,32], index: 0, kind: input, shape index: {}]
  %s1 = inlined_call_operand.vmem [shape: f32[2,32], index: 1, kind: input, shape index: {}]
  %s2 = inlined_call_operand.hbm [shape: bf16[32,32], index: 2, kind: input, shape index: {}]
  %s3 = inlined_call_operand.vmem [shape: f32[1,32], index: 3, kind: input, shape index: {}]
  %s4 = inlined_call_operand.hbm [shape: bf16[32,32], index: 4, kind: input, shape index: {}]
  %s5 = inlined_call_operand.vmem [shape: f32[1,32], index: 5, kind: input, shape index: {}]
  %s6 = inlined_call_operand.vmem [shape: bf16[32,32], index: 6, kind: input, shape index: {}]
  %s7 = inlined_call_operand.hbm [shape: bf16[32,32], index: 7, kind: input, shape index: {}]
  %s8 = inlined_call_operand.vmem [shape: f32[1,32], index: 8, kind: input, shape index: {}]
  %s9 = inlined_call_operand.hbm [shape: f32[2,32], index: 9, kind: output, shape index: {}]
  %s10 = sld [smem:[#allocation0]]
  $region62: #{tpu_custom_call.1} parent=0
    _
  %s12 = ssub.s32 1, %s10
  %s13 = scalar_select 0, %s12, %s10
  $region1: #{tpu_custom_call.1} parent=0
    #allocation2 [shape = 'u8[1024]{0}', space=vmem, size = 0x400, scoped, tag = 'input window, operand 0, single buffered']
    #allocation3 [shape = 's32[1]{0}', space=sflag, size = 0x4, scoped, tag = 'scoped memory for tpu_custom_call.1']
    #allocation4 [shape = 's32[1]{0}', space=sflag, size = 0x4, scoped, tag = 'scoped memory for tpu_custom_call.1']
    #allocation5 [shape = 'u8[8192]{0}', space=vmem, size = 0x2000, scoped, tag = 'input window, operand 2, single buffered']
    #allocation6 [shape = 's32[1]{0}', space=sflag, size = 0x4, scoped, tag = 'scoped memory for tpu_custom_call.1']
    #allocation7 [shape = 'u8[8192]{0}', space=vmem, size = 0x2000, scoped, tag = 'input window, operand 4, single buffered']
    #allocation8 [shape = 'u8[8192]{0}', space=vmem, size = 0x2000, scoped, tag = 'input window, operand 7, single buffered']
    #allocation9 [shape = 's32[1]{0}', space=sflag, size = 0x4, scoped, tag = 'scoped memory for tpu_custom_call.1']
    #allocation10 [shape = 'u8[1024]{0}', space=vmem, size = 0x400, scoped, tag = 'output window, operand 0, single buffered']
    %14 = vsyncpa [#allocation3], 0
    %15 = vsyncpa [#allocation6], 0
    %16 = vsyncpa [#allocation9], 0
    %17 = vsyncpa [#allocation4], 0
    // Predicated region
    $region2: #{tpu_custom_call.1} parent=1 // pred_check
      _
    $region3: #{tpu_custom_call.1} parent=1 // pred_check_branch
      %19 = sbr.rel (0) target = $region5
    $region4: #{tpu_custom_call.1} parent=1 // pred_region
      %s21 = ssub.s32 32, 32
      %22 = vsyncadd [#allocation3], %s21
      %s24 = sshll.u32 [#allocation2], 4
      %s25 = int_to_ptr.vmem [resolvable:$true] %s24
      %27 = dma.hbm_to_vmem [thread:$0]  %s0, 32, %s25, [#allocation3]
    $region5: #{tpu_custom_call.1} parent=1 // pred_fallthru
      _
    // Predicated region
    $region6: #{tpu_custom_call.1} parent=1 // pred_check
      _
    $region7: #{tpu_custom_call.1} parent=1 // pred_check_branch
      %29 = sbr.rel (0) target = $region9
    $region8: #{tpu_custom_call.1} parent=1 // pred_region
      _
    $region9: #{tpu_custom_call.1} parent=1 // pred_fallthru
      _
    // Predicated region
    $region10: #{tpu_custom_call.1} parent=1 // pred_check
      _
    $region11: #{tpu_custom_call.1} parent=1 // pred_check_branch
      %31 = sbr.rel (0) target = $region13
    $region12: #{tpu_custom_call.1} parent=1 // pred_region
      %s33 = ssub.s32 256, 256
      %34 = vsyncadd [#allocation6], %s33
      %s35 = sshll.u32 [#allocation5], 4
      %s36 = int_to_ptr.vmem [resolvable:$true] %s35
      %41 = dma.hbm_to_vmem [thread:$0]  %s2, 256, %s36, [#allocation6], 64, 64, 4
    $region13: #{tpu_custom_call.1} parent=1 // pred_fallthru
      _
    // Predicated region
    $region14: #{tpu_custom_call.1} parent=1 // pred_check
      _
    $region15: #{tpu_custom_call.1} parent=1 // pred_check_branch
      %43 = sbr.rel (0) target = $region17
    $region16: #{tpu_custom_call.1} parent=1 // pred_region
      _
    $region17: #{tpu_custom_call.1} parent=1 // pred_fallthru
      _
    // Predicated region
    $region18: #{tpu_custom_call.1} parent=1 // pred_check
      _
    $region19: #{tpu_custom_call.1} parent=1 // pred_check_branch
      %45 = sbr.rel (0) target = $region21
    $region20: #{tpu_custom_call.1} parent=1 // pred_region
      %s47 = ssub.s32 256, 256
      %48 = vsyncadd [#allocation6], %s47
      %s49 = sshll.u32 [#allocation7], 4
      %s50 = int_to_ptr.vmem [resolvable:$true] %s49
      %55 = dma.hbm_to_vmem [thread:$0]  %s4, 256, %s50, [#allocation6], 64, 64, 4
    $region21: #{tpu_custom_call.1} parent=1 // pred_fallthru
      _
    // Predicated region
    $region22: #{tpu_custom_call.1} parent=1 // pred_check
      _
    $region23: #{tpu_custom_call.1} parent=1 // pred_check_branch
      %57 = sbr.rel (0) target = $region25
    $region24: #{tpu_custom_call.1} parent=1 // pred_region
      _
    $region25: #{tpu_custom_call.1} parent=1 // pred_fallthru
      _
    // Predicated region
    $region26: #{tpu_custom_call.1} parent=1 // pred_check
      _
    $region27: #{tpu_custom_call.1} parent=1 // pred_check_branch
      %59 = sbr.rel (0) target = $region29
    $region28: #{tpu_custom_call.1} parent=1 // pred_region
      _
    $region29: #{tpu_custom_call.1} parent=1 // pred_fallthru
      _
    // Predicated region
    $region30: #{tpu_custom_call.1} parent=1 // pred_check
      _
    $region31: #{tpu_custom_call.1} parent=1 // pred_check_branch
      %61 = sbr.rel (0) target = $region33
    $region32: #{tpu_custom_call.1} parent=1 // pred_region
      %s63 = ssub.s32 256, 256
      %64 = vsyncadd [#allocation9], %s63
      %s65 = sshll.u32 [#allocation8], 4
      %s66 = int_to_ptr.vmem [resolvable:$true] %s65
      %71 = dma.hbm_to_vmem [thread:$0]  %s7, 256, %s66, [#allocation9], 64, 64, 4
    $region33: #{tpu_custom_call.1} parent=1 // pred_fallthru
      _
    // Predicated region
    $region34: #{tpu_custom_call.1} parent=1 // pred_check
      _
    $region35: #{tpu_custom_call.1} parent=1 // pred_check_branch
      %73 = sbr.rel (0) target = $region37
    $region36: #{tpu_custom_call.1} parent=1 // pred_region
      _
    $region37: #{tpu_custom_call.1} parent=1 // pred_fallthru
      _
    // Predicated region
    $region38: #{tpu_custom_call.1} parent=1 // pred_check
      _
    $region39: #{tpu_custom_call.1} parent=1 // pred_check_branch
      %75 = sbr.rel (0) target = $region41
    $region40: #{tpu_custom_call.1} parent=1 // pred_region
      %76 = dma.done [#allocation3], 32
    $region41: #{tpu_custom_call.1} parent=1 // pred_fallthru
      _
    // Predicated region
    $region42: #{tpu_custom_call.1} parent=1 // pred_check
      _
    $region43: #{tpu_custom_call.1} parent=1 // pred_check_branch
      %78 = sbr.rel (0) target = $region45
    $region44: #{tpu_custom_call.1} parent=1 // pred_region
      %79 = dma.done [#allocation6], 256
    $region45: #{tpu_custom_call.1} parent=1 // pred_fallthru
      _
    // Predicated region
    $region46: #{tpu_custom_call.1} parent=1 // pred_check
      _
    $region47: #{tpu_custom_call.1} parent=1 // pred_check_branch
      %81 = sbr.rel (0) target = $region49
    $region48: #{tpu_custom_call.1} parent=1 // pred_region
      %82 = dma.done [#allocation6], 256
    $region49: #{tpu_custom_call.1} parent=1 // pred_fallthru
      _
    // Predicated region
    $region50: #{tpu_custom_call.1} parent=1 // pred_check
      _
    $region51: #{tpu_custom_call.1} parent=1 // pred_check_branch
      %84 = sbr.rel (0) target = $region53
    $region52: #{tpu_custom_call.1} parent=1 // pred_region
      %85 = dma.done [#allocation9], 256
    $region53: #{tpu_custom_call.1} parent=1 // pred_fallthru
      _
    %v87 = vld [vmem:[#allocation2] sm:$0x3]
    %v88 = vld [vmem:[%s1] sm:$0x3]
    %v89 = vpack.c.bf16 %v88, %v88
    %v90 = vld [vmem:[#allocation7] sm:$0xf]
    %v91 = vld [vmem:[#allocation7 + $0x4] sm:$0xf]
    %v92 = vld [vmem:[#allocation7 + $0x8] sm:$0xf]
    %v93 = vld [vmem:[#allocation7 + $0xc] sm:$0xf]
    %v94 = vld [vmem:[%s5] sm:$0x1]
    %v96 = vlaneseq
    %v97 = vshrl.u32 %v96, 7
    %v98 = vsub.s32 0, %v97
    %v99 = vrot.slane %v94, %v98
    %v105 = vunpack.c.l.b16 %v90
    %v106 = vunpack.c.l.b16 %v91
    %v107 = vunpack.c.l.b16 %v92
    %v108 = vunpack.c.l.b16 %v93
    %v109 = vpack.c.b16 %v106, %v105
    %v110 = vpack.c.b16 %v108, %v107
    %vm113 = vcmask 261120
    %v115 = vsel %vm113, %v89, 0
    %117 = vmatprep.subr.bf16.mxu0 0
    %118 = vmatpush1.bf16.msra.mxu0 %v109
    %119 = vmatprep.subr.bf16.mxu0 0
    %120 = vmatpush1.bf16.msra.mxu0 %v110
    %121 = vmatprep.subr.bf16.mxu0 0
    %122 = vmatpush1.bf16.msra.mxu0 0
    %123 = vmatprep.subr.bf16.mxu0 0
    %124 = vmatpush1.bf16.msra.mxu0 0
    %125 = vmatprep.subr.bf16.mxu0 0
    %126 = vmatpush1.bf16.msra.mxu0 0
    %127 = vmatprep.subr.bf16.mxu0 0
    %128 = vmatpush1.bf16.msra.mxu0 0
    %129 = vmatprep.subr.bf16.mxu0 0
    %130 = vmatpush1.bf16.msra.mxu0 0
    %131 = vmatprep.subr.bf16.mxu0 0
    %132 = vmatpush1.bf16.msra.mxu0 0
    %133 = vmatprep.subr.bf16.mxu0 0
    %134 = vmatpush1.bf16.msra.mxu0 0
    %135 = vmatprep.subr.bf16.mxu0 0
    %136 = vmatpush1.bf16.msra.mxu0 0
    %137 = vmatprep.subr.bf16.mxu0 0
    %138 = vmatpush1.bf16.msra.mxu0 0
    %139 = vmatprep.subr.bf16.mxu0 0
    %140 = vmatpush1.bf16.msra.mxu0 0
    %141 = vmatprep.subr.bf16.mxu0 0
    %142 = vmatpush1.bf16.msra.mxu0 0
    %143 = vmatprep.subr.bf16.mxu0 0
    %144 = vmatpush1.bf16.msra.mxu0 0
    %145 = vmatprep.subr.bf16.mxu0 0
    %146 = vmatpush1.bf16.msra.mxu0 0
    %147 = vmatprep.subr.bf16.mxu0 0
    %148 = vmatpush1.bf16.msra.mxu0 0
    %149 = vmatprep.mubr.bf16.mxu0 0
    %150 = vmatmul.mubr.bf16.gmra.mrb[0].mxu0 %v115
    %v151 = vpop.f32.mrb[0].mxu0
    %v152 = vadd.f32 %v99, %v151
    %v153 = vpop.f32.mrb[0].mxu0
    %v154 = vpop.f32.mrb[0].mxu0
    %v155 = vpop.f32.mrb[0].mxu0
    %156 = vdwg.mxu0
    %v157 = vsub.f32 0.0, %v152
    %v158 = vmul.f32 %v157, 1.442695
    %v159 = vpow.pop %v158
    %v160 = vadd.f32 %v159, 1.0
    %v161 = vrcp.pop %v160
    %v162 = vadd.f32 %v161, 1.0
    %v163 = vmul.f32 %v87, %v162
    %v164 = vpack.c.bf16 %v163, %v163
    %v165 = vld [vmem:[%s6] sm:$0xf]
    %v166 = vld [vmem:[%s6 + $0x4] sm:$0xf]
    %v167 = vld [vmem:[%s6 + $0x8] sm:$0xf]
    %v168 = vld [vmem:[%s6 + $0xc] sm:$0xf]
    %v169 = vpack.c.bf16 %v87, %v87
    %v170 = vld [vmem:[#allocation5] sm:$0xf]
    %v171 = vld [vmem:[#allocation5 + $0x4] sm:$0xf]
    %v172 = vld [vmem:[#allocation5 + $0x8] sm:$0xf]
    %v173 = vld [vmem:[#allocation5 + $0xc] sm:$0xf]
    %v174 = vld [vmem:[%s3] sm:$0x1]
    %v176 = vlaneseq
    %v177 = vshrl.u32 %v176, 7
    %v178 = vsub.s32 0, %v177
    %v179 = vrot.slane %v174, %v178
    %v185 = vunpack.c.l.b16 %v170
    %v186 = vunpack.c.l.b16 %v171
    %v187 = vunpack.c.l.b16 %v172
    %v188 = vunpack.c.l.b16 %v173
    %v189 = vpack.c.b16 %v186, %v185
    %v190 = vpack.c.b16 %v188, %v187
    %v194 = vsel %vm113, %v169, 0
    %196 = vmatprep.subr.bf16.mxu0 0
    %197 = vmatpush1.bf16.msra.mxu0 %v189
    %198 = vmatprep.subr.bf16.mxu0 0
    %199 = vmatpush1.bf16.msra.mxu0 %v190
    %200 = vmatprep.subr.bf16.mxu0 0
    %201 = vmatpush1.bf16.msra.mxu0 0
    %202 = vmatprep.subr.bf16.mxu0 0
    %203 = vmatpush1.bf16.msra.mxu0 0
    %204 = vmatprep.subr.bf16.mxu0 0
    %205 = vmatpush1.bf16.msra.mxu0 0
    %206 = vmatprep.subr.bf16.mxu0 0
    %207 = vmatpush1.bf16.msra.mxu0 0
    %208 = vmatprep.subr.bf16.mxu0 0
    %209 = vmatpush1.bf16.msra.mxu0 0
    %210 = vmatprep.subr.bf16.mxu0 0
    %211 = vmatpush1.bf16.msra.mxu0 0
    %212 = vmatprep.subr.bf16.mxu0 0
    %213 = vmatpush1.bf16.msra.mxu0 0
    %214 = vmatprep.subr.bf16.mxu0 0
    %215 = vmatpush1.bf16.msra.mxu0 0
    %216 = vmatprep.subr.bf16.mxu0 0
    %217 = vmatpush1.bf16.msra.mxu0 0
    %218 = vmatprep.subr.bf16.mxu0 0
    %219 = vmatpush1.bf16.msra.mxu0 0
    %220 = vmatprep.subr.bf16.mxu0 0
    %221 = vmatpush1.bf16.msra.mxu0 0
    %222 = vmatprep.subr.bf16.mxu0 0
    %223 = vmatpush1.bf16.msra.mxu0 0
    %224 = vmatprep.subr.bf16.mxu0 0
    %225 = vmatpush1.bf16.msra.mxu0 0
    %226 = vmatprep.subr.bf16.mxu0 0
    %227 = vmatpush1.bf16.msra.mxu0 0
    %228 = vmatprep.mubr.bf16.mxu0 0
    %229 = vmatmul.mubr.bf16.gmra.mrb[0].mxu0 %v194
    %v230 = vpop.f32.mrb[0].mxu0
    %v231 = vadd.f32 %v179, %v230
    %v232 = vpop.f32.mrb[0].mxu0
    %v233 = vpop.f32.mrb[0].mxu0
    %v234 = vpop.f32.mrb[0].mxu0
    %235 = vdwg.mxu0
    %v236 = vsub.f32 0.0, %v231
    %v237 = vmul.f32 %v236, 1.442695
    %v238 = vpow.pop %v237
    %v239 = vadd.f32 %v238, 1.0
    %v240 = vrcp.pop %v239
    %v241 = vadd.f32 %v240, 1.0
    %v242 = vmul.f32 %v88, %v241
    %v243 = vpack.c.bf16 %v242, %v242
    %v244 = vld [vmem:[#allocation8] sm:$0xf]
    %v245 = vld [vmem:[#allocation8 + $0x4] sm:$0xf]
    %v246 = vld [vmem:[#allocation8 + $0x8] sm:$0xf]
    %v247 = vld [vmem:[#allocation8 + $0xc] sm:$0xf]
    %v252 = vunpack.c.l.b16 %v244
    %v253 = vunpack.c.l.b16 %v245
    %v254 = vunpack.c.l.b16 %v246
    %v255 = vunpack.c.l.b16 %v247
    %v256 = vpack.c.b16 %v253, %v252
    %v257 = vpack.c.b16 %v255, %v254
    %v261 = vsel %vm113, %v243, 0
    %263 = vmatprep.subr.bf16.mxu0 0
    %264 = vmatpush1.bf16.msra.mxu0 %v256
    %265 = vmatprep.subr.bf16.mxu0 0
    %266 = vmatpush1.bf16.msra.mxu0 %v257
    %267 = vmatprep.subr.bf16.mxu0 0
    %268 = vmatpush1.bf16.msra.mxu0 0
    %269 = vmatprep.subr.bf16.mxu0 0
    %270 = vmatpush1.bf16.msra.mxu0 0
    %271 = vmatprep.subr.bf16.mxu0 0
    %272 = vmatpush1.bf16.msra.mxu0 0
    %273 = vmatprep.subr.bf16.mxu0 0
    %274 = vmatpush1.bf16.msra.mxu0 0
    %275 = vmatprep.subr.bf16.mxu0 0
    %276 = vmatpush1.bf16.msra.mxu0 0
    %277 = vmatprep.subr.bf16.mxu0 0
    %278 = vmatpush1.bf16.msra.mxu0 0
    %279 = vmatprep.subr.bf16.mxu0 0
    %280 = vmatpush1.bf16.msra.mxu0 0
    %281 = vmatprep.subr.bf16.mxu0 0
    %282 = vmatpush1.bf16.msra.mxu0 0
    %283 = vmatprep.subr.bf16.mxu0 0
    %284 = vmatpush1.bf16.msra.mxu0 0
    %285 = vmatprep.subr.bf16.mxu0 0
    %286 = vmatpush1.bf16.msra.mxu0 0
    %287 = vmatprep.subr.bf16.mxu0 0
    %288 = vmatpush1.bf16.msra.mxu0 0
    %289 = vmatprep.subr.bf16.mxu0 0
    %290 = vmatpush1.bf16.msra.mxu0 0
    %291 = vmatprep.subr.bf16.mxu0 0
    %292 = vmatpush1.bf16.msra.mxu0 0
    %293 = vmatprep.subr.bf16.mxu0 0
    %294 = vmatpush1.bf16.msra.mxu0 0
    %295 = vmatprep.mubr.bf16.mxu0 0
    %296 = vmatmul.mubr.bf16.gmra.mrb[0].mxu0 %v261
    %v297 = vpop.f32.mrb[0].mxu0
    %v298 = vadd.f32 0.0, %v297
    %v299 = vpop.f32.mrb[0].mxu0
    %v300 = vpop.f32.mrb[0].mxu0
    %v301 = vpop.f32.mrb[0].mxu0
    %302 = vdwg.mxu0
    %v307 = vunpack.c.l.b16 %v165
    %v308 = vunpack.c.l.b16 %v166
    %v309 = vunpack.c.l.b16 %v167
    %v310 = vunpack.c.l.b16 %v168
    %v311 = vpack.c.b16 %v308, %v307
    %v312 = vpack.c.b16 %v310, %v309
    %v316 = vsel %vm113, %v164, 0
    %318 = vmatprep.subr.bf16.mxu0 0
    %319 = vmatpush1.bf16.msra.mxu0 %v311
    %320 = vmatprep.subr.bf16.mxu0 0
    %321 = vmatpush1.bf16.msra.mxu0 %v312
    %322 = vmatprep.subr.bf16.mxu0 0
    %323 = vmatpush1.bf16.msra.mxu0 0
    %324 = vmatprep.subr.bf16.mxu0 0
    %325 = vmatpush1.bf16.msra.mxu0 0
    %326 = vmatprep.subr.bf16.mxu0 0
    %327 = vmatpush1.bf16.msra.mxu0 0
    %328 = vmatprep.subr.bf16.mxu0 0
    %329 = vmatpush1.bf16.msra.mxu0 0
    %330 = vmatprep.subr.bf16.mxu0 0
    %331 = vmatpush1.bf16.msra.mxu0 0
    %332 = vmatprep.subr.bf16.mxu0 0
    %333 = vmatpush1.bf16.msra.mxu0 0
    %334 = vmatprep.subr.bf16.mxu0 0
    %335 = vmatpush1.bf16.msra.mxu0 0
    %336 = vmatprep.subr.bf16.mxu0 0
    %337 = vmatpush1.bf16.msra.mxu0 0
    %338 = vmatprep.subr.bf16.mxu0 0
    %339 = vmatpush1.bf16.msra.mxu0 0
    %340 = vmatprep.subr.bf16.mxu0 0
    %341 = vmatpush1.bf16.msra.mxu0 0
    %342 = vmatprep.subr.bf16.mxu0 0
    %343 = vmatpush1.bf16.msra.mxu0 0
    %344 = vmatprep.subr.bf16.mxu0 0
    %345 = vmatpush1.bf16.msra.mxu0 0
    %346 = vmatprep.subr.bf16.mxu0 0
    %347 = vmatpush1.bf16.msra.mxu0 0
    %348 = vmatprep.subr.bf16.mxu0 0
    %349 = vmatpush1.bf16.msra.mxu0 0
    %350 = vmatprep.mubr.bf16.mxu0 0
    %351 = vmatmul.mubr.bf16.gmra.mrb[0].mxu0 %v316
    %v352 = vpop.f32.mrb[0].mxu0
    %v353 = vadd.f32 %v298, %v352
    %v354 = vpop.f32.mrb[0].mxu0
    %v355 = vpop.f32.mrb[0].mxu0
    %v356 = vpop.f32.mrb[0].mxu0
    %357 = vdwg.mxu0
    %v358 = vld [vmem:[%s8] sm:$0x1]
    %v360 = vlaneseq
    %v361 = vshrl.u32 %v360, 7
    %v362 = vsub.s32 0, %v361
    %v363 = vrot.slane %v358, %v362
    %v365 = vadd.f32 %v353, %v363
    %v366 = vmax.f32 %v365, 0.0
    %vm367 = vcmask 254976
    %368 = vst.msk [vmem:[#allocation10] sm:$0x3] %vm367, %v366
    // Predicated region
    $region54: #{tpu_custom_call.1} parent=1 // pred_check
      _
    $region55: #{tpu_custom_call.1} parent=1 // pred_check_branch
      %370 = sbr.rel (0) target = $region57
    $region56: #{tpu_custom_call.1} parent=1 // pred_region
      %s372 = ssub.s32 32, 32
      %373 = vsyncadd [#allocation4], %s372
      %s375 = sshll.u32 [#allocation10], 4
      %s376 = int_to_ptr.vmem [resolvable:$true] %s375
      %378 = dma.vmem_to_hbm [thread:$0]  %s376, 32, %s9, [#allocation4]
    $region57: #{tpu_custom_call.1} parent=1 // pred_fallthru
      _
    // Predicated region
    $region58: #{tpu_custom_call.1} parent=1 // pred_check
      _
    $region59: #{tpu_custom_call.1} parent=1 // pred_check_branch
      %380 = sbr.rel (0) target = $region61
    $region60: #{tpu_custom_call.1} parent=1 // pred_region
      %381 = dma.done [#allocation4], 32
    $region61: #{tpu_custom_call.1} parent=1 // pred_fallthru
      _
    %382 = vsyncpa [#allocation3], 1
    %383 = vsyncpa [#allocation6], 1
    %384 = vsyncpa [#allocation9], 1
    %385 = vsyncpa [#allocation4], 1

</llo_original>
